<compile_context>
chip_gen: v6e
topology: v6e:2x2x1
jax: 0.10.0
libtpu: 0.0.40
codegen_flags: <defaults>
</compile_context>

<pallas_src>
import jax
import jax.numpy as jnp
from jax import lax
from jax.experimental import pallas as pl
from jax.experimental.pallas import tpu as pltpu


def _round_up(x, m):
    return -(-x // m) * m


def _largest_tile(dim, mult, cap):
    """Largest divisor of `dim` that is a multiple of `mult` and <= cap (or None)."""
    best = None
    d = mult
    limit = min(dim, cap)
    while d <= limit:
        if dim % d == 0:
            best = d
        d += mult
    return best


def _blk_bytes(shape, itemsize):
    """Approx. VMEM footprint of one buffered block incl. (sublane, lane) padding."""
    s = tuple(int(d) for d in shape)
    if len(s) < 2:
        s = (1,) * (2 - len(s)) + s
    lead = 1
    for d in s[:-2]:
        lead *= d
    sub = {4: 8, 2: 16, 1: 32}[itemsize]
    return lead * _round_up(s[-2], sub) * _round_up(s[-1], 128) * itemsize


def _make_plan(B, M, K, N1, N2, out_dtype):
    """Tile plan + VMEM budget for the Pallas path, or None -> use plain XLA."""
    itemsize = jnp.dtype(out_dtype).itemsize
    if itemsize not in (2, 4):
        return None
    BM = B * M
    if BM % 8 != 0:
        return None
    Kp = _round_up(K, 128)
    N2p = _round_up(N2, 128)
    # K tile: largest 128-multiple divisor, capped at 256 (v5e scoped VMEM is
    # only 16 MiB by default and its 128x128 MXU gains nothing from deeper K).
    tk = _largest_tile(Kp, 128, 256)
    if tk is None:           # cannot happen (Kp is a 128-multiple); defensive
        return None
    # N1 tile: bf16 sublane multiple (16); prefer >= 2 tiles so both v7x
    # TensorCores get a slice of the "parallel" axis.
    tn1 = _largest_tile(N1, 16, max(16, min(256, N1 // 2)))
    if tn1 is None:
        tn1 = _largest_tile(N1, 16, 256)
    if tn1 is None:
        tn1 = N1             # full-dim fallback for odd / tiny N1

    vmem = (
        2 * _blk_bytes((BM, tk), 2)                 # x block (bf16), double-buffered
        + 2 * _blk_bytes((tn1, tk), 2)              # w1 block (bf16), double-buffered
        + 2 * _blk_bytes((tn1, 1), 4)               # b1 block (f32), double-buffered
        + 1 * _blk_bytes((M, N2p), 2)               # w2^T slab (bf16), single-buffered
        + 1 * _blk_bytes((1, N2p), 4)               # b2 row (f32), single-buffered
        + 2 * _blk_bytes((B, tn1, N2p), itemsize)   # out block, double-buffered
        + _blk_bytes((tn1, BM), 4)                  # f32 accumulator scratch
    )
    # Tiny problems: launch + DMA setup dominates -> plain XLA.
    if BM * Kp * N1 < (1 << 18):
        return None
    # TODO(synk): tile the M / N2 dims of the second matmul (and the batch dim
    # of the output block) instead of keeping the (M, N2) w2^T slab resident;
    # then this guard can be dropped for very large layers (v7x: 64 MiB VMEM).
    if vmem > (40 << 20):
        return None
    return dict(BM=BM, Kp=Kp, N2p=N2p, tk=tk, tn1=tn1,
                vmem_limit=int(vmem * 1.25) + (1 << 20))


def model_kernel(x_ref, w1_ref, b1_ref, w2t_ref, b2_ref, o_ref, acc_ref):
    # Grid: (N1-tile, K-tile); K (last axis) is the reduction -> "arbitrary".
    k = pl.program_id(1)

    @pl.when(k == 0)
    def _():
        # Fold the linear1 bias into the accumulator init (saves a full-tile
        # VALU add + broadcast on the finalize path).
        acc_ref[...] = jnp.broadcast_to(b1_ref[...], acc_ref.shape)

    # Partial yT(tn1, B*M) += w1_blk(tn1, tk) @ x_blk(B*M, tk)^T.
    # Contraction on both LAST dims (q @ k^T form): bf16 MXU inputs, f32 accum,
    # no in-kernel transpose of the activation.
    acc_ref[...] += lax.dot_general(
        w1_ref[...], x_ref[...],
        (((1,), (1,)), ((), ())),
        preferred_element_type=jnp.float32,
    )

    @pl.when(k == pl.num_programs(1) - 1)
    def _():
        yT = acc_ref[...].astype(w2t_ref.dtype)          # (tn1, B*M) -> bf16
        B = o_ref.shape[0]
        M = w2t_ref.shape[0]
        for b in range(B):                               # static; B is compile-time
            out_b = lax.dot_general(
                yT[:, b * M:(b + 1) * M], w2t_ref[...],  # (tn1, M) @ (M, N2p)
                (((1,), (0,)), ((), ())),
                preferred_element_type=jnp.float32,
            ) + b2_ref[...]                               # (tn1, N2p) + (1, N2p)
            o_ref[b] = out_b.astype(o_ref.dtype)


def model_forward_pallas(x, w1, b1, w2, b2, plan=None):
    B, M, K = x.shape
    N1 = w1.shape[0]
    N2 = w2.shape[0]
    assert w1.shape == (N1, K) and b1.shape == (N1,)
    assert w2.shape == (N2, M) and b2.shape == (N2,)

    if plan is None:
        plan = _make_plan(B, M, K, N1, N2, x.dtype)
    assert plan is not None, "shape not suited to the Pallas path; use model_forward()"
    BM, Kp, N2p = plan["BM"], plan["Kp"], plan["N2p"]
    tk, tn1 = plan["tk"], plan["tn1"]

    # Wrapper-side layout / dtype work (one-time XLA ops, mostly on weights):
    x_flat = x.reshape(BM, K).astype(jnp.bfloat16)       # batch folded into lanes
    w1b = w1.astype(jnp.bfloat16)
    if Kp != K:                                          # zero-pad K (numerically inert)
        x_flat = jnp.pad(x_flat, ((0, 0), (0, Kp - K)))
        w1b = jnp.pad(w1b, ((0, 0), (0, Kp - K)))
    w2t = w2.T.astype(jnp.bfloat16)                      # (M, N2): canonical RHS
    b2_row = b2.reshape(1, N2).astype(jnp.float32)
    if N2p != N2:                                        # zero-pad N2 -> lane-dense stores
        w2t = jnp.pad(w2t, ((0, 0), (0, N2p - N2)))
        b2_row = jnp.pad(b2_row, ((0, 0), (0, N2p - N2)))
    b1_col = b1.reshape(N1, 1).astype(jnp.float32)

    grid = (N1 // tn1, Kp // tk)

    out = pl.pallas_call(
        model_kernel,
        out_shape=jax.ShapeDtypeStruct((B, N1, N2p), x.dtype),
        grid_spec=pltpu.PrefetchScalarGridSpec(
            num_scalar_prefetch=0,
            grid=grid,
            in_specs=[
                pl.BlockSpec((BM, tk), lambda i, k: (0, k)),         # x (flattened)
                pl.BlockSpec((tn1, tk), lambda i, k: (i, k)),        # w1
                pl.BlockSpec((tn1, 1), lambda i, k: (i, 0)),         # b1 (column)
                pl.BlockSpec((M, N2p), lambda i, k: (0, 0),
                             pipeline_mode=pl.Buffered(1)),          # w2^T (grid-invariant)
                pl.BlockSpec((1, N2p), lambda i, k: (0, 0),
                             pipeline_mode=pl.Buffered(1)),          # b2 (grid-invariant)
            ],
            out_specs=pl.BlockSpec((B, tn1, N2p), lambda i, k: (0, i, 0)),
            scratch_shapes=[pltpu.VMEM((tn1, BM), jnp.float32)],
        ),
        compiler_params=pltpu.CompilerParams(
            dimension_semantics=("parallel", "arbitrary"),
            vmem_limit_bytes=plan["vmem_limit"],
        ),
    )(x_flat, w1b, b1_col, w2t, b2_row)

    return out[..., :N2] if N2p != N2 else out


def model_forward_reference(x, w1, b1, w2, b2):
    # Pure-JAX reference (also the fast path for tiny / awkward shapes).
    y = jnp.einsum("bmk,nk->bmn", x, w1) + b1
    y = jnp.transpose(y, (0, 2, 1))
    return jnp.einsum("bnm,jm->bnj", y, w2) + b2


def model_forward(x, w1, b1, w2, b2):
    B, M, K = x.shape
    N1, N2 = w1.shape[0], w2.shape[0]
    plan = _make_plan(B, M, K, N1, N2, x.dtype)
    if plan is None:
        return model_forward_reference(x, w1, b1, w2, b2)
    return model_forward_pallas(x, w1, b1, w2, b2, plan=plan)


def _torch_linear_params(kw, kb, out_f, in_f):
    bound = 1.0 / jnp.sqrt(jnp.float32(in_f))
    w = jax.random.uniform(kw, (out_f, in_f), jnp.float32, -bound, bound)
    b = jax.random.uniform(kb, (out_f,), jnp.float32, -bound, bound)
    return w, b


if __name__ == "__main__":
    key = jax.random.PRNGKey(0)
    kx, kw1, kb1, kw2, kb2, kx2 = jax.random.split(key, 6)

    # --- Test 1: shapes that exercise the full Pallas path (tiled grid, bf16).
    #   linear1 = Linear(K, N1) on the last dim of x (B, M, K)
    #   permute(0, 2, 1) -> (B, N1, M)
    #   linear2 = Linear(M, N2) on the new last dim (original seq dim M)
    B, M, K = 2, 128, 512
    N1, N2 = 128, 128
    x = jax.random.normal(kx, (B, M, K), dtype=jnp.float32)
    w1, b1 = _torch_linear_params(kw1, kb1, N1, K)
    w2, b2 = _torch_linear_params(kw2, kb2, N2, M)

    plan = _make_plan(B, M, K, N1, N2, x.dtype)
    assert plan is not None  # make sure the Pallas path (not the XLA gate) runs
    out = model_forward_pallas(x, w1, b1, w2, b2, plan=plan)
    jax.block_until_ready(out)
    ref = model_forward_reference(x, w1, b1, w2, b2)
    assert out.shape == (B, N1, N2)
    # bf16 MXU inputs (f32 accumulation) vs. an all-f32 reference.
    assert jnp.allclose(out, ref, atol=5e-2, rtol=5e-2)

    # --- Test 2: exercises K / N2 zero-padding and the output slice.
    B2, M2, K2 = 2, 64, 320      # K2 padded to 384
    N1b, N2b = 64, 96            # N2 padded to 128, sliced back to 96
    x_b = jax.random.normal(kx2, (B2, M2, K2), dtype=jnp.float32)
    w1_b, b1_b = _torch_linear_params(kw1, kb1, N1b, K2)
    w2_b, b2_b = _torch_linear_params(kw2, kb2, N2b, M2)
    plan_b = _make_plan(B2, M2, K2, N1b, N2b, x_b.dtype)
    assert plan_b is not None
    out_b = model_forward_pallas(x_b, w1_b, b1_b, w2_b, b2_b, plan=plan_b)
    jax.block_until_ready(out_b)
    ref_b = model_forward_reference(x_b, w1_b, b1_b, w2_b, b2_b)
    assert out_b.shape == (B2, N1b, N2b)
    assert jnp.allclose(out_b, ref_b, atol=5e-2, rtol=5e-2)

    # --- Test 3: literal PyTorch shapes (1, 2, 2) — the gated wrapper routes
    # these to plain XLA (Pallas launch overhead would dominate by >100x).
    xt = jax.random.normal(kx, (1, 2, 2), dtype=jnp.float32)
    w1t, b1t = _torch_linear_params(kw1, kb1, 2, 2)
    w2t_, b2t = _torch_linear_params(kw2, kb2, 2, 2)
    tiny = model_forward(xt, w1t, b1t, w2t_, b2t)
    jax.block_until_ready(tiny)
    tiny_ref = model_forward_reference(xt, w1t, b1t, w2t_, b2t)
    assert jnp.allclose(tiny, tiny_ref, atol=1e-5, rtol=1e-5)

    print("KERNEL_OK")
</pallas_src>

<mosaic_0001>
module attributes {stable_mosaic.version = 11 : i64} {
  func.func @model_kernel(%arg0: i32, %arg1: i32, %arg2: memref<256x256xbf16, #tpu.memory_space<vmem>>, %arg3: memref<64x256xbf16, #tpu.memory_space<vmem>>, %arg4: memref<64x1xf32, #tpu.memory_space<vmem>>, %arg5: memref<128x128xbf16, #tpu.memory_space<vmem>>, %arg6: memref<1x128xf32, #tpu.memory_space<vmem>>, %arg7: memref<2x64x128xf32, #tpu.memory_space<vmem>>, %arg8: memref<64x256xf32, #tpu.memory_space<vmem>>) attributes {dimension_semantics = [#tpu.dimension_semantics<parallel>, #tpu.dimension_semantics<arbitrary>], iteration_bounds = array<i64: 2, 2>, scalar_prefetch = 0 : i64, scratch_operands = 1 : i64, tpu.core_type = #tpu.core_type<tc>, window_params = [{transform_indices = @transform_0, window_bounds = array<i64: 256, 256>}, {transform_indices = @transform_1, window_bounds = array<i64: 64, 256>}, {transform_indices = @transform_2, window_bounds = array<i64: 64, 1>}, {pipeline_mode = #tpu.pipeline_mode<synchronous>, transform_indices = @transform_3, window_bounds = array<i64: 128, 128>}, {pipeline_mode = #tpu.pipeline_mode<synchronous>, transform_indices = @transform_4, window_bounds = array<i64: 1, 128>}, {transform_indices = @transform_5, window_bounds = array<i64: 2, 64, 128>}]} {
    %c0_i32 = arith.constant 0 : i32
    %0 = arith.cmpi eq, %arg1, %c0_i32 : i32
    %1 = arith.extui %0 : i1 to i32
    %c0_i32_0 = arith.constant 0 : i32
    %2 = arith.cmpi ne, %1, %c0_i32_0 : i32
    scf.if %2 {
      %c0_9 = arith.constant 0 : index
      %c0_10 = arith.constant 0 : index
      %12 = vector.load %arg4[%c0_9, %c0_10] : memref<64x1xf32, #tpu.memory_space<vmem>>, vector<64x1xf32>
      %13 = vector.shape_cast %12 : vector<64x1xf32> to vector<64x1xf32>
      %14 = vector.broadcast %13 : vector<64x1xf32> to vector<64x256xf32>
      %c0_11 = arith.constant 0 : index
      %c0_12 = arith.constant 0 : index
      %15 = vector.load %arg8[%c0_11, %c0_12] : memref<64x256xf32, #tpu.memory_space<vmem>>, vector<64x256xf32>
      tpu.vector_store %arg8[%c0_11, %c0_12], %14 {strides = array<i32>} : memref<64x256xf32, #tpu.memory_space<vmem>>, vector<64x256xf32>,
    } else {
    }
    %c0 = arith.constant 0 : index
    %c0_1 = arith.constant 0 : index
    %3 = vector.load %arg8[%c0, %c0_1] : memref<64x256xf32, #tpu.memory_space<vmem>>, vector<64x256xf32>
    %c0_2 = arith.constant 0 : index
    %c0_3 = arith.constant 0 : index
    %4 = vector.load %arg3[%c0_2, %c0_3] : memref<64x256xbf16, #tpu.memory_space<vmem>>, vector<64x256xbf16>
    %c0_4 = arith.constant 0 : index
    %c0_5 = arith.constant 0 : index
    %5 = vector.load %arg2[%c0_4, %c0_5] : memref<256x256xbf16, #tpu.memory_space<vmem>>, vector<256x256xbf16>
    %cst = arith.constant dense<0.000000e+00> : vector<64x256xf32>
    %6 = tpu.matmul %4, %5, %cst {dimension_numbers = #tpu.dot_dimension_numbers<[1], [1], [0], [0], [0, 0, 1, 0], [], []>} : vector<64x256xbf16>, vector<256x256xbf16>, vector<64x256xf32> -> vector<64x256xf32>
    %7 = arith.addf %3, %6 : vector<64x256xf32>
    %c0_6 = arith.constant 0 : index
    %c0_7 = arith.constant 0 : index
    %8 = vector.load %arg8[%c0_6, %c0_7] : memref<64x256xf32, #tpu.memory_space<vmem>>, vector<64x256xf32>
    tpu.vector_store %arg8[%c0_6, %c0_7], %7 {strides = array<i32>} : memref<64x256xf32, #tpu.memory_space<vmem>>, vector<64x256xf32>,
    %c1_i32 = arith.constant 1 : i32
    %9 = arith.cmpi eq, %arg1, %c1_i32 : i32
    %10 = arith.extui %9 : i1 to i32
    %c0_i32_8 = arith.constant 0 : i32
    %11 = arith.cmpi ne, %10, %c0_i32_8 : i32
    scf.if %11 {
      %c0_9 = arith.constant 0 : index
      %c0_10 = arith.constant 0 : index
      %12 = vector.load %arg8[%c0_9, %c0_10] : memref<64x256xf32, #tpu.memory_space<vmem>>, vector<64x256xf32>
      %13 = arith.truncf %12 : vector<64x256xf32> to vector<64x256xbf16>
      %14 = vector.extract_strided_slice %13 {offsets = [0, 0], sizes = [64, 128], strides = [1, 1]} : vector<64x256xbf16> to vector<64x128xbf16>
      %c0_11 = arith.constant 0 : index
      %c0_12 = arith.constant 0 : index
      %15 = vector.load %arg5[%c0_11, %c0_12] : memref<128x128xbf16, #tpu.memory_space<vmem>>, vector<128x128xbf16>
      %cst_13 = arith.constant dense<0.000000e+00> : vector<64x128xf32>
      %16 = tpu.matmul %14, %15, %cst_13 {dimension_numbers = #tpu.dot_dimension_numbers<[1], [0], [0], [1], [0, 0, 1, 1], [], []>} : vector<64x128xbf16>, vector<128x128xbf16>, vector<64x128xf32> -> vector<64x128xf32>
      %c0_14 = arith.constant 0 : index
      %c0_15 = arith.constant 0 : index
      %17 = vector.load %arg6[%c0_14, %c0_15] : memref<1x128xf32, #tpu.memory_space<vmem>>, vector<1x128xf32>
      %18 = vector.broadcast %17 : vector<1x128xf32> to vector<64x128xf32>
      %19 = arith.addf %16, %18 : vector<64x128xf32>
      %c0_16 = arith.constant 0 : index
      %c0_17 = arith.constant 0 : index
      %c0_18 = arith.constant 0 : index
      %20 = vector.load %arg7[%c0_16, %c0_17, %c0_18] : memref<2x64x128xf32, #tpu.memory_space<vmem>>, vector<1x64x128xf32>
      %21 = vector.shape_cast %20 : vector<1x64x128xf32> to vector<64x128xf32>
      %22 = vector.shape_cast %19 : vector<64x128xf32> to vector<1x64x128xf32>
      tpu.vector_store %arg7[%c0_16, %c0_17, %c0_18], %22 {strides = array<i32>} : memref<2x64x128xf32, #tpu.memory_space<vmem>>, vector<1x64x128xf32>,
      %23 = vector.extract_strided_slice %13 {offsets = [0, 128], sizes = [64, 128], strides = [1, 1]} : vector<64x256xbf16> to vector<64x128xbf16>
      %c0_19 = arith.constant 0 : index
      %c0_20 = arith.constant 0 : index
      %24 = vector.load %arg5[%c0_19, %c0_20] : memref<128x128xbf16, #tpu.memory_space<vmem>>, vector<128x128xbf16>
      %cst_21 = arith.constant dense<0.000000e+00> : vector<64x128xf32>
      %25 = tpu.matmul %23, %24, %cst_21 {dimension_numbers = #tpu.dot_dimension_numbers<[1], [0], [0], [1], [0, 0, 1, 1], [], []>} : vector<64x128xbf16>, vector<128x128xbf16>, vector<64x128xf32> -> vector<64x128xf32>
      %c0_22 = arith.constant 0 : index
      %c0_23 = arith.constant 0 : index
      %26 = vector.load %arg6[%c0_22, %c0_23] : memref<1x128xf32, #tpu.memory_space<vmem>>, vector<1x128xf32>
      %27 = vector.broadcast %26 : vector<1x128xf32> to vector<64x128xf32>
      %28 = arith.addf %25, %27 : vector<64x128xf32>
      %c1 = arith.constant 1 : index
      %c0_24 = arith.constant 0 : index
      %c0_25 = arith.constant 0 : index
      %29 = vector.load %arg7[%c1, %c0_24, %c0_25] : memref<2x64x128xf32, #tpu.memory_space<vmem>>, vector<1x64x128xf32>
      %30 = vector.shape_cast %29 : vector<1x64x128xf32> to vector<64x128xf32>
      %31 = vector.shape_cast %28 : vector<64x128xf32> to vector<1x64x128xf32>
      tpu.vector_store %arg7[%c1, %c0_24, %c0_25], %31 {strides = array<i32>} : memref<2x64x128xf32, #tpu.memory_space<vmem>>, vector<1x64x128xf32>,
    } else {
    }
    return
  }
  func.func @transform_0(%arg0: i32, %arg1: i32) -> (i32, i32) {
    %c0_i32 = arith.constant 0 : i32
    %c0_i32_0 = arith.constant 0 : i32
    return %c0_i32, %arg1 : i32, i32
  }
  func.func @transform_1(%arg0: i32, %arg1: i32) -> (i32, i32) {
    %c0_i32 = arith.constant 0 : i32
    return %arg0, %arg1 : i32, i32
  }
  func.func @transform_2(%arg0: i32, %arg1: i32) -> (i32, i32) {
    %c0_i32 = arith.constant 0 : i32
    %c0_i32_0 = arith.constant 0 : i32
    return %arg0, %c0_i32 : i32, i32
  }
  func.func @transform_3(%arg0: i32, %arg1: i32) -> (i32, i32) {
    %c0_i32 = arith.constant 0 : i32
    %c0_i32_0 = arith.constant 0 : i32
    %c0_i32_1 = arith.constant 0 : i32
    return %c0_i32, %c0_i32_0 : i32, i32
  }
  func.func @transform_4(%arg0: i32, %arg1: i32) -> (i32, i32) {
    %c0_i32 = arith.constant 0 : i32
    %c0_i32_0 = arith.constant 0 : i32
    %c0_i32_1 = arith.constant 0 : i32
    return %c0_i32, %c0_i32_0 : i32, i32
  }
  func.func @transform_5(%arg0: i32, %arg1: i32) -> (i32, i32, i32) {
    %c0_i32 = arith.constant 0 : i32
    %c0_i32_0 = arith.constant 0 : i32
    %c0_i32_1 = arith.constant 0 : i32
    return %c0_i32, %arg0, %c0_i32_0 : i32, i32, i32
  }
}

</mosaic_0001>

<llo_original>
// kernel: tpu_custom_call.1
$region0: #{tpu_custom_call.1}
  #allocation0 [shape = 'u32[]', space=smem, size = 0x4, offset = 0x4, fixed_abs, tag = 'smem constant byte address 0x4 - core index']
  #allocation1 [shape = 'u32[144,128]{1,0:T(1,128)}', space=vmem, size = 0x12000, scoped, tag = 'internal scratch']
  #allocation2 [shape = 'f32[64,256]{1,0:T(8,128)}', space=vmem, size = 0x10000, scoped, tag = 'scratch operand']
  #allocation9 [shape = 's32[]', space=sflag, size = 0x4, offset = 0, fixed_abs, tag = 'sflag constant byte address 0x0 - dummy sync flag']
  %s0 = inlined_call_operand.hbm [shape: bf16[256,512], index: 0, kind: input, shape index: {}]
  %s1 = inlined_call_operand.hbm [shape: bf16[128,512], index: 1, kind: input, shape index: {}]
  %s2 = inlined_call_operand.vmem [shape: f32[128,1], index: 2, kind: input, shape index: {}]
  %s3 = inlined_call_operand.vmem [shape: bf16[128,128], index: 3, kind: input, shape index: {}]
  %s4 = inlined_call_operand.vmem [shape: f32[1,128], index: 4, kind: input, shape index: {}]
  %s5 = inlined_call_operand.hbm [shape: f32[2,128,128], index: 5, kind: output, shape index: {}]
  %s6 = sld [smem:[#allocation0]]
  $region69: #{tpu_custom_call.1} parent=0
    _
  %s8 = ssub.s32 1, %s6
  %s9 = scalar_select 0, %s8, %s6
  $region1: #{tpu_custom_call.1} parent=0
    #allocation3 [shape = 'u8[262144]{0}', space=vmem, size = 0x40000, scoped, tag = 'input window, operand 0']
    #allocation4 [shape = 's32[2]{0}', space=sflag, size = 0x8, scoped, tag = 'scoped memory for tpu_custom_call.1']
    #allocation5 [shape = 's32[2]{0}', space=sflag, size = 0x8, scoped, tag = 'scoped memory for tpu_custom_call.1']
    #allocation6 [shape = 'u8[65536]{0}', space=vmem, size = 0x10000, scoped, tag = 'input window, operand 1']
    #allocation7 [shape = 's32[2]{0}', space=sflag, size = 0x8, scoped, tag = 'scoped memory for tpu_custom_call.1']
    #allocation8 [shape = 'u8[131072]{0}', space=vmem, size = 0x20000, scoped, tag = 'output window, operand 0']
    %10 = vsyncpa [#allocation4], 0
    %s11 = scalar_lea.sflag [#allocation4], 1
    %12 = vsyncpa %s11, 0
    %13 = vsyncpa [#allocation7], 0
    %s14 = scalar_lea.sflag [#allocation7], 1
    %15 = vsyncpa %s14, 0
    %16 = vsyncpa [#allocation5], 0
    %s17 = scalar_lea.sflag [#allocation5], 1
    %18 = vsyncpa %s17, 0
    loop: start=0, step=1, limit=6
    $region2: #{tpu_custom_call.1} parent=1 // loop_pre_header
      _
    $region3: #{tpu_custom_call.1} parent=1 // loop_header
      %s20 = sphi 0, %s24
      %p21 = scmp.ge.s32.totalorder %s20, 6
      %s27 = sphi 0, %s39
      %s28 = sphi 0, %s35
      %s29 = sphi 0, %s27
      %s30 = sphi 0, %s28
      %s31 = sphi 0, %s29
      %s32 = sphi 0, %s30
      %s42 = sphi 0, %s44
      %s45 = sphi 0, %s42
      %s46 = sphi 0, %s45
      %s62 = sphi 0, %s46
      %s70 = sphi 0, %s72
      %s73 = sphi 0, %s70
      %s74 = sphi 0, %s73
      %s90 = sphi 0, %s74
      %s96 = sphi 0, %s98
      %s99 = sphi 0, %s96
      %s100 = sphi 0, %s99
      %s116 = sphi 0, %s100
      %s120 = sphi 0, %s120
      %s122 = sphi 0, %s120
      %s123 = sphi 0, %s122
      %s137 = sphi 0, %s123
      %s141 = sphi 0, %s141
      %s143 = sphi 0, %s141
      %s144 = sphi 0, %s143
      %s158 = sphi 0, %s144
      %s164 = sphi 0, %s166
      %s167 = sphi 0, %s164
      %s168 = sphi 0, %s167
      %s184 = sphi 0, %s168
    $region4: #{tpu_custom_call.1} parent=1 // loop_header_branch
      %23 = sbr.rel (%p21) target = $region8
    $region5: #{tpu_custom_call.1} parent=1 // loop_body
      %s25 = ssub.s32 %s20, 1
      %s26 = ssub.s32 %s20, 2
      %s33 = sadd.s32 1, %s28
      %p34 = scmp.ge.s32.totalorder %s33, 2
      %s35 = scalar_select %p34, 0, %s33
      %s36 = sadd.s32 1, %s27
      %s37 = scalar_select %p34, %s36, %s27
      %p38 = scmp.ge.s32.totalorder %s37, 2
      %s39 = scalar_select %p38, 0, %s37
      %s40 = ssub.s32 %s28, %s35
      %p41 = scmp.eq.s32.totalorder %s40, 0
      %s43 = sadd.s32 %s42, 1
      %s44 = scalar_select %p41, %s42, %s43
      %p47 = pneg %p41
      %p48 = scmp.eq.s32.totalorder %s20, 3
      %p49 = por %p47, %p48
      %p50 = scmp.ne.s32.totalorder %s42, %s45
      %p51 = scmp.eq.s32.totalorder %s20, 0
      %p52 = por %p50, %p51
      %p53 = scmp.ne.s32.totalorder %s42, %s45
      %p54 = scmp.eq.s32.totalorder %s25, 3
      %p55 = por %p53, %p54
      %p56 = scmp.ne.s32.totalorder %s45, %s46
      %p57 = scmp.eq.s32.totalorder %s25, 0
      %p58 = por %p56, %p57
      %p59 = scmp.ne.s32.totalorder %s45, %s46
      %p60 = scmp.eq.s32.totalorder %s26, 3
      %p61 = por %p59, %p60
      %p63 = scmp.ne.s32.totalorder %s46, %s62
      %p64 = scmp.eq.s32.totalorder %s26, 0
      %p65 = por %p63, %p64
      %s66 = ssub.s32 %s27, %s39
      %s67 = ssub.s32 %s28, %s35
      %s68 = sor.u32 %s66, %s67
      %p69 = scmp.eq.s32.totalorder %s68, 0
      %s71 = sadd.s32 %s70, 1
      %s72 = scalar_select %p69, %s70, %s71
      %p75 = pneg %p69
      %p76 = scmp.eq.s32.totalorder %s20, 3
      %p77 = por %p75, %p76
      %p78 = scmp.ne.s32.totalorder %s70, %s73
      %p79 = scmp.eq.s32.totalorder %s20, 0
      %p80 = por %p78, %p79
      %p81 = scmp.ne.s32.totalorder %s70, %s73
      %p82 = scmp.eq.s32.totalorder %s25, 3
      %p83 = por %p81, %p82
      %p84 = scmp.ne.s32.totalorder %s73, %s74
      %p85 = scmp.eq.s32.totalorder %s25, 0
      %p86 = por %p84, %p85
      %p87 = scmp.ne.s32.totalorder %s73, %s74
      %p88 = scmp.eq.s32.totalorder %s26, 3
      %p89 = por %p87, %p88
      %p91 = scmp.ne.s32.totalorder %s74, %s90
      %p92 = scmp.eq.s32.totalorder %s26, 0
      %p93 = por %p91, %p92
      %s94 = ssub.s32 %s27, %s39
      %p95 = scmp.eq.s32.totalorder %s94, 0
      %s97 = sadd.s32 %s96, 1
      %s98 = scalar_select %p95, %s96, %s97
      %p101 = pneg %p95
      %p102 = scmp.eq.s32.totalorder %s20, 3
      %p103 = por %p101, %p102
      %p104 = scmp.ne.s32.totalorder %s96, %s99
      %p105 = scmp.eq.s32.totalorder %s20, 0
      %p106 = por %p104, %p105
      %p107 = scmp.ne.s32.totalorder %s96, %s99
      %p108 = scmp.eq.s32.totalorder %s25, 3
      %p109 = por %p107, %p108
      %p110 = scmp.ne.s32.totalorder %s99, %s100
      %p111 = scmp.eq.s32.totalorder %s25, 0
      %p112 = por %p110, %p111
      %p113 = scmp.ne.s32.totalorder %s99, %s100
      %p114 = scmp.eq.s32.totalorder %s26, 3
      %p115 = por %p113, %p114
      %p117 = scmp.ne.s32.totalorder %s100, %s116
      %p118 = scmp.eq.s32.totalorder %s26, 0
      %p119 = por %p117, %p118
      %s121 = sadd.s32 %s120, 1
      %p124 = scmp.eq.s32.totalorder %s20, 3
      %p125 = scmp.ne.s32.totalorder %s120, %s122
      %p126 = scmp.eq.s32.totalorder %s20, 0
      %p127 = por %p125, %p126
      %p128 = scmp.ne.s32.totalorder %s120, %s122
      %p129 = scmp.eq.s32.totalorder %s25, 3
      %p130 = por %p128, %p129
      %p131 = scmp.ne.s32.totalorder %s122, %s123
      %p132 = scmp.eq.s32.totalorder %s25, 0
      %p133 = por %p131, %p132
      %p134 = scmp.ne.s32.totalorder %s122, %s123
      %p135 = scmp.eq.s32.totalorder %s26, 3
      %p136 = por %p134, %p135
      %p138 = scmp.ne.s32.totalorder %s123, %s137
      %p139 = scmp.eq.s32.totalorder %s26, 0
      %p140 = por %p138, %p139
      %s142 = sadd.s32 %s141, 1
      %p145 = scmp.eq.s32.totalorder %s20, 3
      %p146 = scmp.ne.s32.totalorder %s141, %s143
      %p147 = scmp.eq.s32.totalorder %s20, 0
      %p148 = por %p146, %p147
      %p149 = scmp.ne.s32.totalorder %s141, %s143
      %p150 = scmp.eq.s32.totalorder %s25, 3
      %p151 = por %p149, %p150
      %p152 = scmp.ne.s32.totalorder %s143, %s144
      %p153 = scmp.eq.s32.totalorder %s25, 0
      %p154 = por %p152, %p153
      %p155 = scmp.ne.s32.totalorder %s143, %s144
      %p156 = scmp.eq.s32.totalorder %s26, 3
      %p157 = por %p155, %p156
      %p159 = scmp.ne.s32.totalorder %s144, %s158
      %p160 = scmp.eq.s32.totalorder %s26, 0
      %p161 = por %p159, %p160
      %s162 = ssub.s32 %s27, %s39
      %p163 = scmp.eq.s32.totalorder %s162, 0
      %s165 = sadd.s32 %s164, 1
      %s166 = scalar_select %p163, %s164, %s165
      %p169 = pneg %p163
      %p170 = scmp.eq.s32.totalorder %s20, 3
      %p171 = por %p169, %p170
      %p172 = scmp.ne.s32.totalorder %s164, %s167
      %p173 = scmp.eq.s32.totalorder %s20, 0
      %p174 = por %p172, %p173
      %p175 = scmp.ne.s32.totalorder %s164, %s167
      %p176 = scmp.eq.s32.totalorder %s25, 3
      %p177 = por %p175, %p176
      %p178 = scmp.ne.s32.totalorder %s167, %s168
      %p179 = scmp.eq.s32.totalorder %s25, 0
      %p180 = por %p178, %p179
      %p181 = scmp.ne.s32.totalorder %s167, %s168
      %p182 = scmp.eq.s32.totalorder %s26, 3
      %p183 = por %p181, %p182
      %p185 = scmp.ne.s32.totalorder %s168, %s184
      %p186 = scmp.eq.s32.totalorder %s26, 0
      %p187 = por %p185, %p186
      %p188 = scmp.le.s32.totalorder 1, %s20
      %p189 = scmp.lt.s32.totalorder %s20, 5
      %p190 = pnand %p188, %p189
      %p191 = pneg %p190
      // Predicated region
      $region9: #{tpu_custom_call.1} parent=5 // pred_check
        _
      $region10: #{tpu_custom_call.1} parent=5 // pred_check_branch
        %193 = sbr.rel (%p190) target = $region12
      $region11: #{tpu_custom_call.1} parent=5 // pred_region
        %s194 = ssub.s32 %s20, 1
        // Predicated region
        $region13: #{tpu_custom_call.1} parent=11 // pred_check
          %p195 = pneg %p133
        $region14: #{tpu_custom_call.1} parent=11 // pred_check_branch
          %197 = sbr.rel (%p195) target = $region16
        $region15: #{tpu_custom_call.1} parent=11 // pred_region
          _
        $region16: #{tpu_custom_call.1} parent=11 // pred_fallthru
          _
        // Predicated region
        $region17: #{tpu_custom_call.1} parent=11 // pred_check
          %p198 = pneg %p154
        $region18: #{tpu_custom_call.1} parent=11 // pred_check_branch
          %200 = sbr.rel (%p198) target = $region20
        $region19: #{tpu_custom_call.1} parent=11 // pred_region
          _
        $region20: #{tpu_custom_call.1} parent=11 // pred_fallthru
          _
      $region12: #{tpu_custom_call.1} parent=5 // pred_fallthru
        _
      %p201 = scmp.lt.s32.totalorder %s20, 4
      // Predicated region
      $region21: #{tpu_custom_call.1} parent=5 // pred_check
        %p202 = pneg %p201
      $region22: #{tpu_custom_call.1} parent=5 // pred_check_branch
        %204 = sbr.rel (%p202) target = $region24
      $region23: #{tpu_custom_call.1} parent=5 // pred_region
        // Predicated region
        $region25: #{tpu_custom_call.1} parent=23 // pred_check
          %p205 = pneg %p52
        $region26: #{tpu_custom_call.1} parent=23 // pred_check_branch
          %207 = sbr.rel (%p205) target = $region28
        $region27: #{tpu_custom_call.1} parent=23 // pred_region
          %s208 = sand.u32 %s42, 1
          %s209 = scalar_lea.sflag [#allocation4], %s208
          %s210 = sand.u32 %s42, 1
          %s211 = smul.addr %s210, 256
          %s212 = scalar_lea.vmem [#allocation3], %s211
          %s213 = smul.u32 2, %s28
          %s215 = ssub.s32 4096, 4096
          %216 = vsyncadd %s209, %s215
          %s217 = smul.addr %s213, 64
          %s218 = scalar_lea.hbm %s0, %s217
          %s219 = sshll.u32 %s212, 4
          %s220 = int_to_ptr.vmem [resolvable:$true] %s219
          %225 = dma.hbm_to_vmem [thread:$0]  %s218, 4096, %s220, %s209, 256, 128, 8
        $region28: #{tpu_custom_call.1} parent=23 // pred_fallthru
          _
        // Predicated region
        $region29: #{tpu_custom_call.1} parent=23 // pred_check
          %p226 = pneg %p80
        $region30: #{tpu_custom_call.1} parent=23 // pred_check_branch
          %228 = sbr.rel (%p226) target = $region32
        $region31: #{tpu_custom_call.1} parent=23 // pred_region
          %s229 = sand.u32 %s70, 1
          %s230 = scalar_lea.sflag [#allocation7], %s229
          %s231 = sand.u32 %s70, 1
          %s232 = smul.addr %s231, 64
          %s233 = scalar_lea.vmem [#allocation6], %s232
          %s234 = smul.u32 8, %s27
          %s235 = smul.u32 2, %s28
          %s237 = ssub.s32 1024, 1024
          %238 = vsyncadd %s230, %s237
          %s239 = smul.addr %s234, 4
          %s240 = sadd.s32 %s235, %s239
          %s241 = smul.addr %s240, 64
          %s242 = scalar_lea.hbm %s1, %s241
          %s243 = sshll.u32 %s233, 4
          %s244 = int_to_ptr.vmem [resolvable:$true] %s243
          %249 = dma.hbm_to_vmem [thread:$0]  %s242, 1024, %s244, %s230, 256, 128, 8
        $region32: #{tpu_custom_call.1} parent=23 // pred_fallthru
          _
        // Predicated region
        $region33: #{tpu_custom_call.1} parent=23 // pred_check
          %p250 = pneg %p106
        $region34: #{tpu_custom_call.1} parent=23 // pred_check_branch
          %252 = sbr.rel (%p250) target = $region36
        $region35: #{tpu_custom_call.1} parent=23 // pred_region
          %s253 = smul.u32 8, %s27
          %p254 = scmp.lt.s32.totalorder %s253, 15
          %s255 = scalar_select %p254, %s253, 15
          %s256 = smul.addr %s255, 8
          %s257 = scalar_lea.vmem %s2, %s256
          %s258 = smul.u32 8, %s27
        $region36: #{tpu_custom_call.1} parent=23 // pred_fallthru
          _
      $region24: #{tpu_custom_call.1} parent=5 // pred_fallthru
        _
      %p259 = scmp.le.s32.totalorder 1, %s20
      %p260 = scmp.lt.s32.totalorder %s20, 5
      %p261 = pnand %p259, %p260
      %p262 = pneg %p261
      // Predicated region
      $region37: #{tpu_custom_call.1} parent=5 // pred_check
        _
      $region38: #{tpu_custom_call.1} parent=5 // pred_check_branch
        %264 = sbr.rel (%p261) target = $region40
      $region39: #{tpu_custom_call.1} parent=5 // pred_region
        %s265 = ssub.s32 %s20, 1
        %s266 = sand.u32 %s45, 1
        %s267 = scalar_lea.sflag [#allocation4], %s266
        %s268 = sand.u32 %s45, 1
        %s269 = smul.addr %s268, 256
        %s270 = scalar_lea.vmem [#allocation3], %s269
        // Predicated region
        $region41: #{tpu_custom_call.1} parent=39 // pred_check
          %p271 = pneg %p58
        $region42: #{tpu_custom_call.1} parent=39 // pred_check_branch
          %273 = sbr.rel (%p271) target = $region44
        $region43: #{tpu_custom_call.1} parent=39 // pred_region
          %274 = dma.done %s267, 4096
        $region44: #{tpu_custom_call.1} parent=39 // pred_fallthru
          _
        %s275 = sand.u32 %s73, 1
        %s276 = scalar_lea.sflag [#allocation7], %s275
        %s277 = sand.u32 %s73, 1
        %s278 = smul.addr %s277, 64
        %s279 = scalar_lea.vmem [#allocation6], %s278
        // Predicated region
        $region45: #{tpu_custom_call.1} parent=39 // pred_check
          %p280 = pneg %p86
        $region46: #{tpu_custom_call.1} parent=39 // pred_check_branch
          %282 = sbr.rel (%p280) target = $region48
        $region47: #{tpu_custom_call.1} parent=39 // pred_region
          %283 = dma.done %s276, 1024
        $region48: #{tpu_custom_call.1} parent=39 // pred_fallthru
          _
        %s284 = sand.u32 %s45, 1
        %s285 = scalar_lea.sflag [#allocation4], %s284
        %s286 = sand.u32 %s45, 1
        %s287 = smul.addr %s286, 256
        %s288 = scalar_lea.vmem [#allocation3], %s287
        %p289 = pneg %p58
        %p290 = pneg %p55
        %s291 = sand.u32 %s73, 1
        %s292 = scalar_lea.sflag [#allocation7], %s291
        %s293 = sand.u32 %s73, 1
        %s294 = smul.addr %s293, 64
        %s295 = scalar_lea.vmem [#allocation6], %s294
        %p296 = pneg %p86
        %p297 = pneg %p83
        %s298 = smul.u32 8, %s29
        %p299 = scmp.lt.s32.totalorder %s298, 15
        %s300 = scalar_select %p299, %s298, 15
        %s301 = smul.addr %s300, 8
        %s302 = scalar_lea.vmem %s2, %s301
        %p303 = pneg %p112
        %p304 = pneg %p109
        %p305 = pneg %p133
        %p306 = pneg %p130
        %p307 = pneg %p154
        %p308 = pneg %p151
        %p309 = pneg %p180
        %p310 = pneg %p177
        %s311 = sand.u32 %s167, 1
        %s312 = scalar_lea.sflag [#allocation5], %s311
        %s313 = sand.u32 %s167, 1
        %s314 = smul.addr %s313, 128
        %s315 = scalar_lea.vmem [#allocation8], %s314
        %s316 = smul.u32 2, %s30
        %s317 = smul.u32 8, %s29
        %s318 = smul.u32 2, %s30
        %s319 = smul.u32 8, %s29
        %p320 = scmp.lt.s32.totalorder %s319, 15
        %s321 = scalar_select %p320, %s319, 15
        %s322 = smul.addr %s321, 8
        %s323 = scalar_lea.vmem %s2, %s322
        %s324 = smul.u32 8, %s29
        %s325 = smul.u32 8, %s29
        %p327 = scmp.eq.s32.totalorder %s30, 0
        // Predicated region
        $region49: #{tpu_custom_call.1} parent=39 // pred_check
          %p328 = pneg %p327
        $region50: #{tpu_custom_call.1} parent=39 // pred_check_branch
          %330 = sbr.rel (%p328) target = $region52
        $region51: #{tpu_custom_call.1} parent=39 // pred_region
          %v331 = vld [vmem:[%s323] sm:$0xff]
          %v332 = vld [vmem:[%s323 + $0x8] sm:$0xff]
          %v333 = vld [vmem:[%s323 + $0x10] sm:$0xff]
          %v334 = vld [vmem:[%s323 + $0x18] sm:$0xff]
          %v335 = vld [vmem:[%s323 + $0x20] sm:$0xff]
          %v336 = vld [vmem:[%s323 + $0x28] sm:$0xff]
          %v337 = vld [vmem:[%s323 + $0x30] sm:$0xff]
          %v338 = vld [vmem:[%s323 + $0x38] sm:$0xff]
          %340 = vset.pattern.permute.xlu0 0
          %341 = vperm.xlu0 %340, %v331
          %v342 = vpop.permute.xlu0 %341
          %345 = vset.pattern.permute.xlu0 0
          %346 = vperm.xlu0 %345, %v332
          %v347 = vpop.permute.xlu0 %346
          %350 = vset.pattern.permute.xlu0 0
          %351 = vperm.xlu0 %350, %v333
          %v352 = vpop.permute.xlu0 %351
          %355 = vset.pattern.permute.xlu0 0
          %356 = vperm.xlu0 %355, %v334
          %v357 = vpop.permute.xlu0 %356
          %360 = vset.pattern.permute.xlu0 0
          %361 = vperm.xlu0 %360, %v335
          %v362 = vpop.permute.xlu0 %361
          %365 = vset.pattern.permute.xlu0 0
          %366 = vperm.xlu0 %365, %v336
          %v367 = vpop.permute.xlu0 %366
          %370 = vset.pattern.permute.xlu0 0
          %371 = vperm.xlu0 %370, %v337
          %v372 = vpop.permute.xlu0 %371
          %375 = vset.pattern.permute.xlu0 0
          %376 = vperm.xlu0 %375, %v338
          %v377 = vpop.permute.xlu0 %376
          %379 = vst [vmem:[#allocation2] sm:$0xff] %v342
          %380 = vst [vmem:[#allocation2 + $0x8] sm:$0xff] %v342
          %381 = vst [vmem:[#allocation2 + $0x10] sm:$0xff] %v347
          %382 = vst [vmem:[#allocation2 + $0x18] sm:$0xff] %v347
          %383 = vst [vmem:[#allocation2 + $0x20] sm:$0xff] %v352
          %384 = vst [vmem:[#allocation2 + $0x28] sm:$0xff] %v352
          %385 = vst [vmem:[#allocation2 + $0x30] sm:$0xff] %v357
          %386 = vst [vmem:[#allocation2 + $0x38] sm:$0xff] %v357
          %387 = vst [vmem:[#allocation2 + $0x40] sm:$0xff] %v362
          %388 = vst [vmem:[#allocation2 + $0x48] sm:$0xff] %v362
          %389 = vst [vmem:[#allocation2 + $0x50] sm:$0xff] %v367
          %390 = vst [vmem:[#allocation2 + $0x58] sm:$0xff] %v367
          %391 = vst [vmem:[#allocation2 + $0x60] sm:$0xff] %v372
          %392 = vst [vmem:[#allocation2 + $0x68] sm:$0xff] %v372
          %393 = vst [vmem:[#allocation2 + $0x70] sm:$0xff] %v377
          %394 = vst [vmem:[#allocation2 + $0x78] sm:$0xff] %v377
        $region52: #{tpu_custom_call.1} parent=39 // pred_fallthru
          _
        %v395 = vld [vmem:[#allocation2] sm:$0xff]
        %v396 = vld [vmem:[#allocation2 + $0x8] sm:$0xff]
        %v397 = vld [vmem:[#allocation2 + $0x10] sm:$0xff]
        %v398 = vld [vmem:[#allocation2 + $0x18] sm:$0xff]
        %v399 = vld [vmem:[#allocation2 + $0x20] sm:$0xff]
        %v400 = vld [vmem:[#allocation2 + $0x28] sm:$0xff]
        %v401 = vld [vmem:[#allocation2 + $0x30] sm:$0xff]
        %v402 = vld [vmem:[#allocation2 + $0x38] sm:$0xff]
        %v403 = vld [vmem:[#allocation2 + $0x40] sm:$0xff]
        %v404 = vld [vmem:[#allocation2 + $0x48] sm:$0xff]
        %v405 = vld [vmem:[#allocation2 + $0x50] sm:$0xff]
        %v406 = vld [vmem:[#allocation2 + $0x58] sm:$0xff]
        %v407 = vld [vmem:[#allocation2 + $0x60] sm:$0xff]
        %v408 = vld [vmem:[#allocation2 + $0x68] sm:$0xff]
        %v409 = vld [vmem:[#allocation2 + $0x70] sm:$0xff]
        %v410 = vld [vmem:[#allocation2 + $0x78] sm:$0xff]
        %v411 = vld [vmem:[%s279] sm:$0xff]
        %v412 = vld [vmem:[%s279 + $0x8] sm:$0xff]
        %v413 = vld [vmem:[%s279 + $0x10] sm:$0xff]
        %v414 = vld [vmem:[%s279 + $0x18] sm:$0xff]
        %v415 = vld [vmem:[%s279 + $0x20] sm:$0xff]
        %v416 = vld [vmem:[%s279 + $0x28] sm:$0xff]
        %v417 = vld [vmem:[%s279 + $0x30] sm:$0xff]
        %v418 = vld [vmem:[%s279 + $0x38] sm:$0xff]
        %v419 = vld [vmem:[%s270] sm:$0xff]
        %v420 = vld [vmem:[%s270 + $0x8] sm:$0xff]
        %v421 = vld [vmem:[%s270 + $0x10] sm:$0xff]
        %v422 = vld [vmem:[%s270 + $0x18] sm:$0xff]
        %v423 = vld [vmem:[%s270 + $0x20] sm:$0xff]
        %v424 = vld [vmem:[%s270 + $0x28] sm:$0xff]
        %v425 = vld [vmem:[%s270 + $0x30] sm:$0xff]
        %v426 = vld [vmem:[%s270 + $0x38] sm:$0xff]
        %v427 = vld [vmem:[%s270 + $0x40] sm:$0xff]
        %v428 = vld [vmem:[%s270 + $0x48] sm:$0xff]
        %v429 = vld [vmem:[%s270 + $0x50] sm:$0xff]
        %v430 = vld [vmem:[%s270 + $0x58] sm:$0xff]
        %v431 = vld [vmem:[%s270 + $0x60] sm:$0xff]
        %v432 = vld [vmem:[%s270 + $0x68] sm:$0xff]
        %v433 = vld [vmem:[%s270 + $0x70] sm:$0xff]
        %v434 = vld [vmem:[%s270 + $0x78] sm:$0xff]
        %v435 = vld [vmem:[%s270 + $0x80] sm:$0xff]
        %v436 = vld [vmem:[%s270 + $0x88] sm:$0xff]
        %v437 = vld [vmem:[%s270 + $0x90] sm:$0xff]
        %v438 = vld [vmem:[%s270 + $0x98] sm:$0xff]
        %v439 = vld [vmem:[%s270 + $0xa0] sm:$0xff]
        %v440 = vld [vmem:[%s270 + $0xa8] sm:$0xff]
        %v441 = vld [vmem:[%s270 + $0xb0] sm:$0xff]
        %v442 = vld [vmem:[%s270 + $0xb8] sm:$0xff]
        %v443 = vld [vmem:[%s270 + $0xc0] sm:$0xff]
        %v444 = vld [vmem:[%s270 + $0xc8] sm:$0xff]
        %v445 = vld [vmem:[%s270 + $0xd0] sm:$0xff]
        %v446 = vld [vmem:[%s270 + $0xd8] sm:$0xff]
        %v447 = vld [vmem:[%s270 + $0xe0] sm:$0xff]
        %v448 = vld [vmem:[%s270 + $0xe8] sm:$0xff]
        %v449 = vld [vmem:[%s270 + $0xf0] sm:$0xff]
        %v450 = vld [vmem:[%s270 + $0xf8] sm:$0xff]
        %v459 = vunpack.c.l.b16 %v411
        %v460 = vunpack.c.h.b16 %v411
        %v461 = vunpack.c.l.b16 %v412
        %v462 = vunpack.c.h.b16 %v412
        %v463 = vunpack.c.l.b16 %v413
        %v464 = vunpack.c.h.b16 %v413
        %v465 = vunpack.c.l.b16 %v414
        %v466 = vunpack.c.h.b16 %v414
        %v467 = vunpack.c.l.b16 %v415
        %v468 = vunpack.c.h.b16 %v415
        %v469 = vunpack.c.l.b16 %v416
        %v470 = vunpack.c.h.b16 %v416
        %v471 = vunpack.c.l.b16 %v417
        %v472 = vunpack.c.h.b16 %v417
        %v473 = vunpack.c.l.b16 %v418
        %v474 = vunpack.c.h.b16 %v418
        %v475 = vpack.c.b16 %v461, %v459
        %v476 = vpack.c.b16 %v462, %v460
        %v477 = vpack.c.b16 %v465, %v463
        %v478 = vpack.c.b16 %v466, %v464
        %v479 = vpack.c.b16 %v469, %v467
        %v480 = vpack.c.b16 %v470, %v468
        %v481 = vpack.c.b16 %v473, %v471
        %v482 = vpack.c.b16 %v474, %v472
        %v523 = vunpack.c.l.b16 %v419
        %v524 = vunpack.c.h.b16 %v419
        %v525 = vunpack.c.l.b16 %v420
        %v526 = vunpack.c.h.b16 %v420
        %v527 = vunpack.c.l.b16 %v421
        %v528 = vunpack.c.h.b16 %v421
        %v529 = vunpack.c.l.b16 %v422
        %v530 = vunpack.c.h.b16 %v422
        %v531 = vunpack.c.l.b16 %v423
        %v532 = vunpack.c.h.b16 %v423
        %v533 = vunpack.c.l.b16 %v424
        %v534 = vunpack.c.h.b16 %v424
        %v535 = vunpack.c.l.b16 %v425
        %v536 = vunpack.c.h.b16 %v425
        %v537 = vunpack.c.l.b16 %v426
        %v538 = vunpack.c.h.b16 %v426
        %v539 = vunpack.c.l.b16 %v427
        %v540 = vunpack.c.h.b16 %v427
        %v541 = vunpack.c.l.b16 %v428
        %v542 = vunpack.c.h.b16 %v428
        %v543 = vunpack.c.l.b16 %v429
        %v544 = vunpack.c.h.b16 %v429
        %v545 = vunpack.c.l.b16 %v430
        %v546 = vunpack.c.h.b16 %v430
        %v547 = vunpack.c.l.b16 %v431
        %v548 = vunpack.c.h.b16 %v431
        %v549 = vunpack.c.l.b16 %v432
        %v550 = vunpack.c.h.b16 %v432
        %v551 = vunpack.c.l.b16 %v433
        %v552 = vunpack.c.h.b16 %v433
        %v553 = vunpack.c.l.b16 %v434
        %v554 = vunpack.c.h.b16 %v434
        %v555 = vunpack.c.l.b16 %v435
        %v556 = vunpack.c.h.b16 %v435
        %v557 = vunpack.c.l.b16 %v436
        %v558 = vunpack.c.h.b16 %v436
        %v559 = vunpack.c.l.b16 %v437
        %v560 = vunpack.c.h.b16 %v437
        %v561 = vunpack.c.l.b16 %v438
        %v562 = vunpack.c.h.b16 %v438
        %v563 = vunpack.c.l.b16 %v439
        %v564 = vunpack.c.h.b16 %v439
        %v565 = vunpack.c.l.b16 %v440
        %v566 = vunpack.c.h.b16 %v440
        %v567 = vunpack.c.l.b16 %v441
        %v568 = vunpack.c.h.b16 %v441
        %v569 = vunpack.c.l.b16 %v442
        %v570 = vunpack.c.h.b16 %v442
        %v571 = vunpack.c.l.b16 %v443
        %v572 = vunpack.c.h.b16 %v443
        %v573 = vunpack.c.l.b16 %v444
        %v574 = vunpack.c.h.b16 %v444
        %v575 = vunpack.c.l.b16 %v445
        %v576 = vunpack.c.h.b16 %v445
        %v577 = vunpack.c.l.b16 %v446
        %v578 = vunpack.c.h.b16 %v446
        %v579 = vunpack.c.l.b16 %v447
        %v580 = vunpack.c.h.b16 %v447
        %v581 = vunpack.c.l.b16 %v448
        %v582 = vunpack.c.h.b16 %v448
        %v583 = vunpack.c.l.b16 %v449
        %v584 = vunpack.c.h.b16 %v449
        %v585 = vunpack.c.l.b16 %v450
        %v586 = vunpack.c.h.b16 %v450
        %v587 = vpack.c.b16 %v525, %v523
        %v588 = vpack.c.b16 %v526, %v524
        %v589 = vpack.c.b16 %v529, %v527
        %v590 = vpack.c.b16 %v530, %v528
        %v591 = vpack.c.b16 %v533, %v531
        %v592 = vpack.c.b16 %v534, %v532
        %v593 = vpack.c.b16 %v537, %v535
        %v594 = vpack.c.b16 %v538, %v536
        %v595 = vpack.c.b16 %v541, %v539
        %v596 = vpack.c.b16 %v542, %v540
        %v597 = vpack.c.b16 %v545, %v543
        %v598 = vpack.c.b16 %v546, %v544
        %v599 = vpack.c.b16 %v549, %v547
        %v600 = vpack.c.b16 %v550, %v548
        %v601 = vpack.c.b16 %v553, %v551
        %v602 = vpack.c.b16 %v554, %v552
        %v603 = vpack.c.b16 %v557, %v555
        %v604 = vpack.c.b16 %v558, %v556
        %v605 = vpack.c.b16 %v561, %v559
        %v606 = vpack.c.b16 %v562, %v560
        %v607 = vpack.c.b16 %v565, %v563
        %v608 = vpack.c.b16 %v566, %v564
        %v609 = vpack.c.b16 %v569, %v567
        %v610 = vpack.c.b16 %v570, %v568
        %v611 = vpack.c.b16 %v573, %v571
        %v612 = vpack.c.b16 %v574, %v572
        %v613 = vpack.c.b16 %v577, %v575
        %v614 = vpack.c.b16 %v578, %v576
        %v615 = vpack.c.b16 %v581, %v579
        %v616 = vpack.c.b16 %v582, %v580
        %v617 = vpack.c.b16 %v585, %v583
        %v618 = vpack.c.b16 %v586, %v584
        %651 = vmatprep.subr.bf16.mxu0 %v602
        %652 = vmatpush1.bf16.xpose.msra.mxu0 %v601
        %653 = vmatprep.subr.bf16.mxu0 %v600
        %654 = vmatpush1.bf16.xpose.msra.mxu0 %v599
        %655 = vmatprep.subr.bf16.mxu0 %v598
        %656 = vmatpush1.bf16.xpose.msra.mxu0 %v597
        %657 = vmatprep.subr.bf16.mxu0 %v596
        %658 = vmatpush1.bf16.xpose.msra.mxu0 %v595
        %659 = vmatprep.subr.bf16.mxu0 %v594
        %660 = vmatpush1.bf16.xpose.msra.mxu0 %v593
        %661 = vmatprep.subr.bf16.mxu0 %v592
        %662 = vmatpush1.bf16.xpose.msra.mxu0 %v591
        %663 = vmatprep.subr.bf16.mxu0 %v590
        %664 = vmatpush1.bf16.xpose.msra.mxu0 %v589
        %665 = vmatprep.subr.bf16.mxu0 %v588
        %666 = vmatpush1.bf16.xpose.msra.mxu0 %v587
        %667 = vmatprep.subr.bf16.mxu0 %v618
        %668 = vmatpush2.bf16.xpose.msra.mxu0 %v617
        %669 = vmatprep.subr.bf16.mxu0 %v616
        %670 = vmatpush2.bf16.xpose.msra.mxu0 %v615
        %671 = vmatprep.subr.bf16.mxu0 %v614
        %672 = vmatpush2.bf16.xpose.msra.mxu0 %v613
        %673 = vmatprep.subr.bf16.mxu0 %v612
        %674 = vmatpush2.bf16.xpose.msra.mxu0 %v611
        %675 = vmatprep.subr.bf16.mxu0 %v610
        %676 = vmatpush2.bf16.xpose.msra.mxu0 %v609
        %677 = vmatprep.subr.bf16.mxu0 %v608
        %678 = vmatpush2.bf16.xpose.msra.mxu0 %v607
        %679 = vmatprep.subr.bf16.mxu0 %v606
        %680 = vmatpush2.bf16.xpose.msra.mxu0 %v605
        %681 = vmatprep.subr.bf16.mxu0 %v604
        %682 = vmatpush2.bf16.xpose.msra.mxu0 %v603
        %683 = vmatprep.mubr.bf16.mxu0 %v476
        %684 = vmatmul.mubr.bf16.gmra.mxu0 %v475
        %v685 = vpop.f32.mrf.mxu0
        %v686 = vadd.f32 0.0, %v685
        %v687 = vpop.f32.mrf.mxu0
        %v688 = vadd.f32 0.0, %v687
        %v689 = vpop.f32.mrf.mxu0
        %v690 = vadd.f32 0.0, %v689
        %v691 = vpop.f32.mrf.mxu0
        %v692 = vadd.f32 0.0, %v691
        %693 = vmatprep.mubr.bf16.mxu0 %v478
        %694 = vmatmul.mubr.bf16.gmra.mxu0 %v477
        %v695 = vpop.f32.mrf.mxu0
        %v696 = vadd.f32 0.0, %v695
        %v697 = vpop.f32.mrf.mxu0
        %v698 = vadd.f32 0.0, %v697
        %v699 = vpop.f32.mrf.mxu0
        %v700 = vadd.f32 0.0, %v699
        %v701 = vpop.f32.mrf.mxu0
        %v702 = vadd.f32 0.0, %v701
        %703 = vmatprep.mubr.bf16.mxu0 %v480
        %704 = vmatmul.mubr.bf16.gmra.mxu0 %v479
        %v705 = vpop.f32.mrf.mxu0
        %v706 = vadd.f32 0.0, %v705
        %v707 = vpop.f32.mrf.mxu0
        %v708 = vadd.f32 0.0, %v707
        %v709 = vpop.f32.mrf.mxu0
        %v710 = vadd.f32 0.0, %v709
        %v711 = vpop.f32.mrf.mxu0
        %v712 = vadd.f32 0.0, %v711
        %713 = vmatprep.mubr.bf16.mxu0 %v482
        %714 = vmatmul.mubr.bf16.gmra.mxu0 %v481
        %v715 = vpop.f32.mrf.mxu0
        %v716 = vadd.f32 0.0, %v715
        %v717 = vpop.f32.mrf.mxu0
        %v718 = vadd.f32 0.0, %v717
        %v719 = vpop.f32.mrf.mxu0
        %v720 = vadd.f32 0.0, %v719
        %v721 = vpop.f32.mrf.mxu0
        %v722 = vadd.f32 0.0, %v721
        %723 = vdwg.mxu0
        %v724 = vadd.f32 %v395, %v686
        %v725 = vadd.f32 %v396, %v688
        %v726 = vadd.f32 %v397, %v690
        %v727 = vadd.f32 %v398, %v692
        %v728 = vadd.f32 %v399, %v696
        %v729 = vadd.f32 %v400, %v698
        %v730 = vadd.f32 %v401, %v700
        %v731 = vadd.f32 %v402, %v702
        %v732 = vadd.f32 %v403, %v706
        %v733 = vadd.f32 %v404, %v708
        %v734 = vadd.f32 %v405, %v710
        %v735 = vadd.f32 %v406, %v712
        %v736 = vadd.f32 %v407, %v716
        %v737 = vadd.f32 %v408, %v718
        %v738 = vadd.f32 %v409, %v720
        %v739 = vadd.f32 %v410, %v722
        %740 = vst [vmem:[#allocation2] sm:$0xff] %v724
        %741 = vst [vmem:[#allocation2 + $0x8] sm:$0xff] %v725
        %742 = vst [vmem:[#allocation2 + $0x10] sm:$0xff] %v726
        %743 = vst [vmem:[#allocation2 + $0x18] sm:$0xff] %v727
        %744 = vst [vmem:[#allocation2 + $0x20] sm:$0xff] %v728
        %745 = vst [vmem:[#allocation2 + $0x28] sm:$0xff] %v729
        %746 = vst [vmem:[#allocation2 + $0x30] sm:$0xff] %v730
        %747 = vst [vmem:[#allocation2 + $0x38] sm:$0xff] %v731
        %748 = vst [vmem:[#allocation2 + $0x40] sm:$0xff] %v732
        %749 = vst [vmem:[#allocation2 + $0x48] sm:$0xff] %v733
        %750 = vst [vmem:[#allocation2 + $0x50] sm:$0xff] %v734
        %751 = vst [vmem:[#allocation2 + $0x58] sm:$0xff] %v735
        %752 = vst [vmem:[#allocation2 + $0x60] sm:$0xff] %v736
        %753 = vst [vmem:[#allocation2 + $0x68] sm:$0xff] %v737
        %754 = vst [vmem:[#allocation2 + $0x70] sm:$0xff] %v738
        %755 = vst [vmem:[#allocation2 + $0x78] sm:$0xff] %v739
        %p756 = scmp.eq.s32.totalorder %s30, 1
        // Predicated region
        $region53: #{tpu_custom_call.1} parent=39 // pred_check
          %p757 = pneg %p756
        $region54: #{tpu_custom_call.1} parent=39 // pred_check_branch
          %759 = sbr.rel (%p757) target = $region56
        $region55: #{tpu_custom_call.1} parent=39 // pred_region
          %v760 = vld [vmem:[#allocation2] sm:$0xff]
          %v761 = vld [vmem:[#allocation2 + $0x8] sm:$0xff]
          %v762 = vld [vmem:[#allocation2 + $0x10] sm:$0xff]
          %v763 = vld [vmem:[#allocation2 + $0x18] sm:$0xff]
          %v764 = vld [vmem:[#allocation2 + $0x20] sm:$0xff]
          %v765 = vld [vmem:[#allocation2 + $0x28] sm:$0xff]
          %v766 = vld [vmem:[#allocation2 + $0x30] sm:$0xff]
          %v767 = vld [vmem:[#allocation2 + $0x38] sm:$0xff]
          %v768 = vld [vmem:[#allocation2 + $0x40] sm:$0xff]
          %v769 = vld [vmem:[#allocation2 + $0x48] sm:$0xff]
          %v770 = vld [vmem:[#allocation2 + $0x50] sm:$0xff]
          %v771 = vld [vmem:[#allocation2 + $0x58] sm:$0xff]
          %v772 = vld [vmem:[#allocation2 + $0x60] sm:$0xff]
          %v773 = vld [vmem:[#allocation2 + $0x68] sm:$0xff]
          %v774 = vld [vmem:[#allocation2 + $0x70] sm:$0xff]
          %v775 = vld [vmem:[#allocation2 + $0x78] sm:$0xff]
          %v776 = vpack.c.bf16 %v762, %v760
          %v777 = vpack.c.bf16 %v763, %v761
          %v778 = vpack.c.bf16 %v766, %v764
          %v779 = vpack.c.bf16 %v767, %v765
          %v780 = vpack.c.bf16 %v770, %v768
          %v781 = vpack.c.bf16 %v771, %v769
          %v782 = vpack.c.bf16 %v774, %v772
          %v783 = vpack.c.bf16 %v775, %v773
          %v784 = vld [vmem:[%s3] sm:$0xf]
          %v785 = vld [vmem:[%s3 + $0x4] sm:$0xf]
          %v786 = vld [vmem:[%s3 + $0x8] sm:$0xf]
          %v787 = vld [vmem:[%s3 + $0xc] sm:$0xf]
          %v788 = vld [vmem:[%s3 + $0x10] sm:$0xf]
          %v789 = vld [vmem:[%s3 + $0x14] sm:$0xf]
          %v790 = vld [vmem:[%s3 + $0x18] sm:$0xf]
          %v791 = vld [vmem:[%s3 + $0x1c] sm:$0xf]
          %v792 = vld [vmem:[%s3 + $0x20] sm:$0xf]
          %v793 = vld [vmem:[%s3 + $0x24] sm:$0xf]
          %v794 = vld [vmem:[%s3 + $0x28] sm:$0xf]
          %v795 = vld [vmem:[%s3 + $0x2c] sm:$0xf]
          %v796 = vld [vmem:[%s3 + $0x30] sm:$0xf]
          %v797 = vld [vmem:[%s3 + $0x34] sm:$0xf]
          %v798 = vld [vmem:[%s3 + $0x38] sm:$0xf]
          %v799 = vld [vmem:[%s3 + $0x3c] sm:$0xf]
          %v800 = vld [vmem:[%s4] sm:$0x1]
          %v802 = vlaneseq
          %v803 = vshrl.u32 %v802, 7
          %v804 = vsub.s32 0, %v803
          %v805 = vrot.slane %v800, %v804
          %v823 = vunpack.c.l.b16 %v784
          %v824 = vunpack.c.l.b16 %v785
          %v825 = vunpack.c.l.b16 %v786
          %v826 = vunpack.c.l.b16 %v787
          %v827 = vunpack.c.l.b16 %v788
          %v828 = vunpack.c.l.b16 %v789
          %v829 = vunpack.c.l.b16 %v790
          %v830 = vunpack.c.l.b16 %v791
          %v831 = vunpack.c.l.b16 %v792
          %v832 = vunpack.c.l.b16 %v793
          %v833 = vunpack.c.l.b16 %v794
          %v834 = vunpack.c.l.b16 %v795
          %v835 = vunpack.c.l.b16 %v796
          %v836 = vunpack.c.l.b16 %v797
          %v837 = vunpack.c.l.b16 %v798
          %v838 = vunpack.c.l.b16 %v799
          %v839 = vpack.c.b16 %v824, %v823
          %v840 = vpack.c.b16 %v826, %v825
          %v841 = vpack.c.b16 %v828, %v827
          %v842 = vpack.c.b16 %v830, %v829
          %v843 = vpack.c.b16 %v832, %v831
          %v844 = vpack.c.b16 %v834, %v833
          %v845 = vpack.c.b16 %v836, %v835
          %v846 = vpack.c.b16 %v838, %v837
          %855 = vmatprep.subr.bf16.mxu0 0
          %856 = vmatpush1.bf16.msra.mxu0 %v846
          %857 = vmatprep.subr.bf16.mxu0 0
          %858 = vmatpush1.bf16.msra.mxu0 %v845
          %859 = vmatprep.subr.bf16.mxu0 0
          %860 = vmatpush1.bf16.msra.mxu0 %v844
          %861 = vmatprep.subr.bf16.mxu0 0
          %862 = vmatpush1.bf16.msra.mxu0 %v843
          %863 = vmatprep.subr.bf16.mxu0 0
          %864 = vmatpush1.bf16.msra.mxu0 %v842
          %865 = vmatprep.subr.bf16.mxu0 0
          %866 = vmatpush1.bf16.msra.mxu0 %v841
          %867 = vmatprep.subr.bf16.mxu0 0
          %868 = vmatpush1.bf16.msra.mxu0 %v840
          %869 = vmatprep.subr.bf16.mxu0 0
          %870 = vmatpush1.bf16.msra.mxu0 %v839
          %871 = vmatprep.subr.bf16.mxu0 0
          %872 = vmatpush2.bf16.msra.mxu0 0
          %873 = vmatprep.subr.bf16.mxu0 0
          %874 = vmatpush2.bf16.msra.mxu0 0
          %875 = vmatprep.subr.bf16.mxu0 0
          %876 = vmatpush2.bf16.msra.mxu0 0
          %877 = vmatprep.subr.bf16.mxu0 0
          %878 = vmatpush2.bf16.msra.mxu0 0
          %879 = vmatprep.subr.bf16.mxu0 0
          %880 = vmatpush2.bf16.msra.mxu0 0
          %881 = vmatprep.subr.bf16.mxu0 0
          %882 = vmatpush2.bf16.msra.mxu0 0
          %883 = vmatprep.subr.bf16.mxu0 0
          %884 = vmatpush2.bf16.msra.mxu0 0
          %885 = vmatprep.subr.bf16.mxu0 0
          %886 = vmatpush2.bf16.msra.mxu0 0
          %887 = vmatprep.mubr.bf16.mxu0 0
          %888 = vmatmul.mubr.bf16.gmra.mxu0 %v776
          %v889 = vpop.f32.mrf.mxu0
          %v890 = vadd.f32 %v805, %v889
          %v891 = vpop.f32.mrf.mxu0
          %v892 = vpop.f32.mrf.mxu0
          %v893 = vadd.f32 %v805, %v892
          %v894 = vpop.f32.mrf.mxu0
          %895 = vmatprep.mubr.bf16.mxu0 0
          %896 = vmatmul.mubr.bf16.gmra.mxu0 %v778
          %v897 = vpop.f32.mrf.mxu0
          %v898 = vadd.f32 %v805, %v897
          %v899 = vpop.f32.mrf.mxu0
          %v900 = vpop.f32.mrf.mxu0
          %v901 = vadd.f32 %v805, %v900
          %v902 = vpop.f32.mrf.mxu0
          %903 = vmatprep.mubr.bf16.mxu0 0
          %904 = vmatmul.mubr.bf16.gmra.mxu0 %v780
          %v905 = vpop.f32.mrf.mxu0
          %v906 = vadd.f32 %v805, %v905
          %v907 = vpop.f32.mrf.mxu0
          %v908 = vpop.f32.mrf.mxu0
          %v909 = vadd.f32 %v805, %v908
          %v910 = vpop.f32.mrf.mxu0
          %911 = vmatprep.mubr.bf16.mxu0 0
          %912 = vmatmul.mubr.bf16.gmra.mxu0 %v782
          %v913 = vpop.f32.mrf.mxu0
          %v914 = vadd.f32 %v805, %v913
          %v915 = vpop.f32.mrf.mxu0
          %v916 = vpop.f32.mrf.mxu0
          %v917 = vadd.f32 %v805, %v916
          %v918 = vpop.f32.mrf.mxu0
          %919 = vdwg.mxu0
          %920 = vst [vmem:[%s315] sm:$0xff] %v890
          %921 = vst [vmem:[%s315 + $0x8] sm:$0xff] %v893
          %922 = vst [vmem:[%s315 + $0x10] sm:$0xff] %v898
          %923 = vst [vmem:[%s315 + $0x18] sm:$0xff] %v901
          %924 = vst [vmem:[%s315 + $0x20] sm:$0xff] %v906
          %925 = vst [vmem:[%s315 + $0x28] sm:$0xff] %v909
          %926 = vst [vmem:[%s315 + $0x30] sm:$0xff] %v914
          %927 = vst [vmem:[%s315 + $0x38] sm:$0xff] %v917
          %v928 = vld [vmem:[%s3] sm:$0xf]
          %v929 = vld [vmem:[%s3 + $0x4] sm:$0xf]
          %v930 = vld [vmem:[%s3 + $0x8] sm:$0xf]
          %v931 = vld [vmem:[%s3 + $0xc] sm:$0xf]
          %v932 = vld [vmem:[%s3 + $0x10] sm:$0xf]
          %v933 = vld [vmem:[%s3 + $0x14] sm:$0xf]
          %v934 = vld [vmem:[%s3 + $0x18] sm:$0xf]
          %v935 = vld [vmem:[%s3 + $0x1c] sm:$0xf]
          %v936 = vld [vmem:[%s3 + $0x20] sm:$0xf]
          %v937 = vld [vmem:[%s3 + $0x24] sm:$0xf]
          %v938 = vld [vmem:[%s3 + $0x28] sm:$0xf]
          %v939 = vld [vmem:[%s3 + $0x2c] sm:$0xf]
          %v940 = vld [vmem:[%s3 + $0x30] sm:$0xf]
          %v941 = vld [vmem:[%s3 + $0x34] sm:$0xf]
          %v942 = vld [vmem:[%s3 + $0x38] sm:$0xf]
          %v943 = vld [vmem:[%s3 + $0x3c] sm:$0xf]
          %v944 = vld [vmem:[%s4] sm:$0x1]
          %v946 = vlaneseq
          %v947 = vshrl.u32 %v946, 7
          %v948 = vsub.s32 0, %v947
          %v949 = vrot.slane %v944, %v948
          %v967 = vunpack.c.l.b16 %v928
          %v968 = vunpack.c.l.b16 %v929
          %v969 = vunpack.c.l.b16 %v930
          %v970 = vunpack.c.l.b16 %v931
          %v971 = vunpack.c.l.b16 %v932
          %v972 = vunpack.c.l.b16 %v933
          %v973 = vunpack.c.l.b16 %v934
          %v974 = vunpack.c.l.b16 %v935
          %v975 = vunpack.c.l.b16 %v936
          %v976 = vunpack.c.l.b16 %v937
          %v977 = vunpack.c.l.b16 %v938
          %v978 = vunpack.c.l.b16 %v939
          %v979 = vunpack.c.l.b16 %v940
          %v980 = vunpack.c.l.b16 %v941
          %v981 = vunpack.c.l.b16 %v942
          %v982 = vunpack.c.l.b16 %v943
          %v983 = vpack.c.b16 %v968, %v967
          %v984 = vpack.c.b16 %v970, %v969
          %v985 = vpack.c.b16 %v972, %v971
          %v986 = vpack.c.b16 %v974, %v973
          %v987 = vpack.c.b16 %v976, %v975
          %v988 = vpack.c.b16 %v978, %v977
          %v989 = vpack.c.b16 %v980, %v979
          %v990 = vpack.c.b16 %v982, %v981
          %999 = vmatprep.subr.bf16.mxu0 0
          %1000 = vmatpush1.bf16.msra.mxu0 %v990
          %1001 = vmatprep.subr.bf16.mxu0 0
          %1002 = vmatpush1.bf16.msra.mxu0 %v989
          %1003 = vmatprep.subr.bf16.mxu0 0
          %1004 = vmatpush1.bf16.msra.mxu0 %v988
          %1005 = vmatprep.subr.bf16.mxu0 0
          %1006 = vmatpush1.bf16.msra.mxu0 %v987
          %1007 = vmatprep.subr.bf16.mxu0 0
          %1008 = vmatpush1.bf16.msra.mxu0 %v986
          %1009 = vmatprep.subr.bf16.mxu0 0
          %1010 = vmatpush1.bf16.msra.mxu0 %v985
          %1011 = vmatprep.subr.bf16.mxu0 0
          %1012 = vmatpush1.bf16.msra.mxu0 %v984
          %1013 = vmatprep.subr.bf16.mxu0 0
          %1014 = vmatpush1.bf16.msra.mxu0 %v983
          %1015 = vmatprep.subr.bf16.mxu0 0
          %1016 = vmatpush2.bf16.msra.mxu0 0
          %1017 = vmatprep.subr.bf16.mxu0 0
          %1018 = vmatpush2.bf16.msra.mxu0 0
          %1019 = vmatprep.subr.bf16.mxu0 0
          %1020 = vmatpush2.bf16.msra.mxu0 0
          %1021 = vmatprep.subr.bf16.mxu0 0
          %1022 = vmatpush2.bf16.msra.mxu0 0
          %1023 = vmatprep.subr.bf16.mxu0 0
          %1024 = vmatpush2.bf16.msra.mxu0 0
          %1025 = vmatprep.subr.bf16.mxu0 0
          %1026 = vmatpush2.bf16.msra.mxu0 0
          %1027 = vmatprep.subr.bf16.mxu0 0
          %1028 = vmatpush2.bf16.msra.mxu0 0
          %1029 = vmatprep.subr.bf16.mxu0 0
          %1030 = vmatpush2.bf16.msra.mxu0 0
          %1031 = vmatprep.mubr.bf16.mxu0 0
          %1032 = vmatmul.mubr.bf16.gmra.mxu0 %v777
          %v1033 = vpop.f32.mrf.mxu0
          %v1034 = vadd.f32 %v949, %v1033
          %v1035 = vpop.f32.mrf.mxu0
          %v1036 = vpop.f32.mrf.mxu0
          %v1037 = vadd.f32 %v949, %v1036
          %v1038 = vpop.f32.mrf.mxu0
          %1039 = vmatprep.mubr.bf16.mxu0 0
          %1040 = vmatmul.mubr.bf16.gmra.mxu0 %v779
          %v1041 = vpop.f32.mrf.mxu0
          %v1042 = vadd.f32 %v949, %v1041
          %v1043 = vpop.f32.mrf.mxu0
          %v1044 = vpop.f32.mrf.mxu0
          %v1045 = vadd.f32 %v949, %v1044
          %v1046 = vpop.f32.mrf.mxu0
          %1047 = vmatprep.mubr.bf16.mxu0 0
          %1048 = vmatmul.mubr.bf16.gmra.mxu0 %v781
          %v1049 = vpop.f32.mrf.mxu0
          %v1050 = vadd.f32 %v949, %v1049
          %v1051 = vpop.f32.mrf.mxu0
          %v1052 = vpop.f32.mrf.mxu0
          %v1053 = vadd.f32 %v949, %v1052
          %v1054 = vpop.f32.mrf.mxu0
          %1055 = vmatprep.mubr.bf16.mxu0 0
          %1056 = vmatmul.mubr.bf16.gmra.mxu0 %v783
          %v1057 = vpop.f32.mrf.mxu0
          %v1058 = vadd.f32 %v949, %v1057
          %v1059 = vpop.f32.mrf.mxu0
          %v1060 = vpop.f32.mrf.mxu0
          %v1061 = vadd.f32 %v949, %v1060
          %v1062 = vpop.f32.mrf.mxu0
          %1063 = vdwg.mxu0
          %s1064 = scalar_lea.vmem %s315, 64 [#allocation8]
          %1065 = vst [vmem:[%s1064] sm:$0xff] %v1034
          %1066 = vst [vmem:[%s1064 + $0x8] sm:$0xff] %v1037
          %1067 = vst [vmem:[%s1064 + $0x10] sm:$0xff] %v1042
          %1068 = vst [vmem:[%s1064 + $0x18] sm:$0xff] %v1045
          %1069 = vst [vmem:[%s1064 + $0x20] sm:$0xff] %v1050
          %1070 = vst [vmem:[%s1064 + $0x28] sm:$0xff] %v1053
          %1071 = vst [vmem:[%s1064 + $0x30] sm:$0xff] %v1058
          %1072 = vst [vmem:[%s1064 + $0x38] sm:$0xff] %v1061
        $region56: #{tpu_custom_call.1} parent=39 // pred_fallthru
          _
        %s1073 = sand.u32 %s167, 1
        %s1074 = scalar_lea.sflag [#allocation5], %s1073
        %s1075 = sand.u32 %s167, 1
        %s1076 = smul.addr %s1075, 128
        %s1077 = scalar_lea.vmem [#allocation8], %s1076
        // Predicated region
        $region57: #{tpu_custom_call.1} parent=39 // pred_check
          %p1078 = pneg %p177
        $region58: #{tpu_custom_call.1} parent=39 // pred_check_branch
          %1080 = sbr.rel (%p1078) target = $region60
        $region59: #{tpu_custom_call.1} parent=39 // pred_region
          #allocation10 [shape = 'u32[6]{0}', space=smem, size = 0x18, scoped, tag = 'DMA stride descriptor']
          %s1081 = smul.u32 8, %s29
          %s1083 = ssub.s32 2048, 2048
          %1084 = vsyncadd %s1074, %s1083
          %s1085 = smul.addr %s1081, 128
          %s1086 = scalar_lea.hbm %s5, %s1085
          %s1088 = sshll.u32 1, 14
          %s1089 = sxor.u32 4294967295, %s1088
          %s1092 = sshll.u32 7, 18
          %s1093 = sxor.u32 4294967295, %s1092
          %s1094 = sand.u32 0, %s1093
          %s1096 = sor.u32 %s1094, 0
          %s1097 = sshll.u32 %s1077, 4
          %s1098 = int_to_ptr.vmem [resolvable:$true] %s1097
          %1104 = sst [smem:[#allocation10]] 1024
          %s1105 = scalar_lea.smem [#allocation10], 1
          %1106 = sst [smem:[%s1105]] 2048
          %s1107 = scalar_lea.smem [#allocation10], 2
          %1108 = sst [smem:[%s1107]] 8
          %s1109 = scalar_lea.smem [#allocation10], 3
          %1110 = sst [smem:[%s1109]] 128
          %s1111 = scalar_lea.smem [#allocation10], 4
          %1112 = sst [smem:[%s1111]] 128
          %s1113 = scalar_lea.smem [#allocation10], 5
          %1114 = sst [smem:[%s1113]] 8
          %1116 = dma.general %s1098, 2048, %s1086, %s1074, 131072, [#allocation10], %s1096, 0
        $region60: #{tpu_custom_call.1} parent=39 // pred_fallthru
          _
      $region40: #{tpu_custom_call.1} parent=5 // pred_fallthru
        _
      %p1117 = scmp.le.s32.totalorder 2, %s20
      // Predicated region
      $region61: #{tpu_custom_call.1} parent=5 // pred_check
        %p1118 = pneg %p1117
      $region62: #{tpu_custom_call.1} parent=5 // pred_check_branch
        %1120 = sbr.rel (%p1118) target = $region64
      $region63: #{tpu_custom_call.1} parent=5 // pred_region
        %s1121 = ssub.s32 %s20, 2
        // Predicated region
        $region65: #{tpu_custom_call.1} parent=63 // pred_check
          %p1122 = pneg %p183
        $region66: #{tpu_custom_call.1} parent=63 // pred_check_branch
          %1124 = sbr.rel (%p1122) target = $region68
        $region67: #{tpu_custom_call.1} parent=63 // pred_region
          %s1125 = sand.u32 %s168, 1
          %s1126 = scalar_lea.sflag [#allocation5], %s1125
          %s1127 = sand.u32 %s168, 1
          %s1128 = smul.addr %s1127, 128
          %s1129 = scalar_lea.vmem [#allocation8], %s1128
          %1130 = dma.done %s1126, 2048
        $region68: #{tpu_custom_call.1} parent=63 // pred_fallthru
          _
      $region64: #{tpu_custom_call.1} parent=5 // pred_fallthru
        _
    $region6: #{tpu_custom_call.1} parent=1 // loop_footer
      %s24 = sadd.s32 1, %s20
    $region7: #{tpu_custom_call.1} parent=1 // loop_footer_branch
      %19 = sbr.rel target = $region3
    $region8: #{tpu_custom_call.1} parent=1 // loop_exit
      _
    %1131 = vsyncpa [#allocation4], 1
    %s1132 = scalar_lea.sflag [#allocation4], 1
    %1133 = vsyncpa %s1132, 1
    %1134 = vsyncpa [#allocation7], 1
    %s1135 = scalar_lea.sflag [#allocation7], 1
    %1136 = vsyncpa %s1135, 1
    %1137 = vsyncpa [#allocation5], 1
    %s1138 = scalar_lea.sflag [#allocation5], 1
    %1139 = vsyncpa %s1138, 1

</llo_original>
